<compile_context>
chip_gen: v5e
topology: v5e:2x2
jax: 0.10.0
libtpu: 0.0.40
codegen_flags: <defaults>
</compile_context>

<pallas_src>
import jax
import jax.numpy as jnp
from jax.experimental import pallas as pl
from jax.experimental.pallas import tpu as pltpu


def _round_up(x, m):
    return (x + m - 1) // m * m


def _swiglu_kernel(x_ref, w1_ref, b1_ref, w2_ref, b2_ref, w3_ref, b3_ref,
                   o_ref, acc_ref):
    # x_ref: (tm, Din_p)          w1/w2: (Din_p, th)   b1/b2: (1, th)  [f32]
    # w3:    (th, Dout_p)         b3:    (1, Dout_p)   [f32]
    # o_ref: (tm, Dout_p)         acc_ref: (tm, Dout_p) f32 scratch
    h = pl.program_id(1)

    @pl.when(h == 0)
    def _():
        acc_ref[...] = jnp.zeros_like(acc_ref)

    x = x_ref[...]
    x1 = jnp.dot(x, w1_ref[...], preferred_element_type=jnp.float32) + b1_ref[...]
    x2 = jnp.dot(x, w2_ref[...], preferred_element_type=jnp.float32) + b2_ref[...]
    # SiLU(x1) * x2 in f32 (ffn_ln is Identity since subln=False).
    hidden = (x1 * jax.nn.sigmoid(x1)) * x2
    acc_ref[...] += jnp.dot(hidden.astype(w3_ref.dtype), w3_ref[...],
                            preferred_element_type=jnp.float32)

    @pl.when(h == pl.num_programs(1) - 1)
    def _():
        # b3 added exactly once, in the finalize step.
        o_ref[...] = (acc_ref[...] + b3_ref[...]).astype(o_ref.dtype)


def swiglu_pallas(x, w1, b1, w2, b2, w3, b3, *, tm=256, th=512,
                  compute_dtype=jnp.bfloat16):
    """x: (..., D_in); w1,w2: (D_in, H); b1,b2: (H,); w3: (H, D_out); b3: (D_out,)."""
    lead_shape = x.shape[:-1]
    d_in = x.shape[-1]
    h = w1.shape[1]
    d_out = w3.shape[1]
    out_dtype = x.dtype

    x2d = x.reshape(-1, d_in)
    m = x2d.shape[0]

    # --- tile sizes & padded extents (lane width 128, sublane 8) ----------
    din_p = _round_up(d_in, 128)
    dout_p = _round_up(d_out, 128)
    tm_eff = min(tm, _round_up(m, 8))
    m_p = _round_up(m, tm_eff)
    th_eff = min(th, _round_up(h, 128))
    h_p = _round_up(h, th_eff)

    # --- zero-pad operands (math preserving) -------------------------------
    x_p = jnp.zeros((m_p, din_p), compute_dtype).at[:m, :d_in].set(
        x2d.astype(compute_dtype))
    w1_p = jnp.zeros((din_p, h_p), compute_dtype).at[:d_in, :h].set(
        w1.astype(compute_dtype))
    w2_p = jnp.zeros((din_p, h_p), compute_dtype).at[:d_in, :h].set(
        w2.astype(compute_dtype))
    w3_p = jnp.zeros((h_p, dout_p), compute_dtype).at[:h, :d_out].set(
        w3.astype(compute_dtype))
    b1_p = jnp.zeros((1, h_p), jnp.float32).at[0, :h].set(b1.astype(jnp.float32))
    b2_p = jnp.zeros((1, h_p), jnp.float32).at[0, :h].set(b2.astype(jnp.float32))
    b3_p = jnp.zeros((1, dout_p), jnp.float32).at[0, :d_out].set(
        b3.astype(jnp.float32))

    n_m = m_p // tm_eff
    n_h = h_p // th_eff
    grid = (n_m, n_h)

    # --- cost estimate (advisory) ------------------------------------------
    flops = 2 * m * (2 * d_in * h + h * d_out)
    transcendentals = m * h  # sigmoid
    bytes_accessed = int(
        x_p.size * x_p.dtype.itemsize
        + (w1_p.size + w2_p.size + w3_p.size) * jnp.dtype(compute_dtype).itemsize
        + (b1_p.size + b2_p.size + b3_p.size) * 4
        + m_p * dout_p * jnp.dtype(out_dtype).itemsize)

    # --- VMEM budget (double-buffered in/out tiles + accumulator) ----------
    isz = jnp.dtype(compute_dtype).itemsize
    in_tile_bytes = (tm_eff * din_p * isz          # x tile
                     + 2 * din_p * th_eff * isz    # w1, w2 tiles
                     + th_eff * dout_p * isz       # w3 tile
                     + 2 * th_eff * 4 + dout_p * 4)  # biases (f32)
    out_tile_bytes = tm_eff * dout_p * jnp.dtype(out_dtype).itemsize
    acc_bytes = tm_eff * dout_p * 4
    vmem_needed = 2 * (in_tile_bytes + out_tile_bytes) + acc_bytes
    vmem_limit = int(min(max(int(vmem_needed * 1.5), 8 << 20), 64 << 20))

    out = pl.pallas_call(
        _swiglu_kernel,
        out_shape=jax.ShapeDtypeStruct((m_p, dout_p), out_dtype),
        grid_spec=pltpu.PrefetchScalarGridSpec(
            num_scalar_prefetch=0,
            grid=grid,
            in_specs=[
                pl.BlockSpec((tm_eff, din_p), lambda i, hh: (i, 0)),   # x rows
                pl.BlockSpec((din_p, th_eff), lambda i, hh: (0, hh)),  # w1 H-tile
                pl.BlockSpec((1, th_eff), lambda i, hh: (0, hh)),      # b1 H-tile
                pl.BlockSpec((din_p, th_eff), lambda i, hh: (0, hh)),  # w2 H-tile
                pl.BlockSpec((1, th_eff), lambda i, hh: (0, hh)),      # b2 H-tile
                pl.BlockSpec((th_eff, dout_p), lambda i, hh: (hh, 0)),  # w3 H-tile
                pl.BlockSpec((1, dout_p), lambda i, hh: (0, 0)),       # b3
            ],
            out_specs=pl.BlockSpec((tm_eff, dout_p), lambda i, hh: (i, 0)),
            scratch_shapes=[pltpu.VMEM((tm_eff, dout_p), jnp.float32)],
        ),
        compiler_params=pltpu.CompilerParams(
            dimension_semantics=("parallel", "arbitrary"),
            vmem_limit_bytes=vmem_limit),
        cost_estimate=pl.CostEstimate(
            flops=flops, transcendentals=transcendentals,
            bytes_accessed=bytes_accessed),
    )(x_p, w1_p, b1_p, w2_p, b2_p, w3_p, b3_p)

    return out[:m, :d_out].reshape(*lead_shape, d_out)


def _swiglu_ref(x, w1, b1, w2, b2, w3, b3):
    x1 = x @ w1 + b1
    x2 = x @ w2 + b2
    hidden = jax.nn.silu(x1) * x2
    return hidden @ w3 + b3


if __name__ == "__main__":
    key = jax.random.PRNGKey(0)

    # --- Case 1: toy shapes matching the module defaults -------------------
    B, N = 2, 8
    in_features, hidden_features, out_features = 32, 64, 32
    kx, k1, k2, k3, kb1, kb2, kb3 = jax.random.split(key, 7)

    x = jax.random.normal(kx, (B, N, in_features), dtype=jnp.float32)
    w1 = jax.random.normal(k1, (in_features, hidden_features), jnp.float32) * 0.05
    b1 = jax.random.normal(kb1, (hidden_features,), jnp.float32) * 0.01
    w2 = jax.random.normal(k2, (in_features, hidden_features), jnp.float32) * 0.05
    b2 = jax.random.normal(kb2, (hidden_features,), jnp.float32) * 0.01
    w3 = jax.random.normal(k3, (hidden_features, out_features), jnp.float32) * 0.05
    b3 = jax.random.normal(kb3, (out_features,), jnp.float32) * 0.01

    out = swiglu_pallas(x, w1, b1, w2, b2, w3, b3)
    out = jax.block_until_ready(out)
    ref = _swiglu_ref(x, w1, b1, w2, b2, w3, b3)
    assert out.shape == (B, N, out_features)
    # bf16 MXU operands -> small expected precision delta vs f32 reference.
    assert jnp.allclose(out, ref, atol=3e-2, rtol=3e-2), "mismatch vs reference (case 1)"

    # --- Case 2: exercises M-tiling and multi-step H accumulation ----------
    key2 = jax.random.PRNGKey(1)
    kx, k1, k2, k3, kb1, kb2, kb3 = jax.random.split(key2, 7)
    B2, N2 = 2, 256
    d_in2, h2, d_out2 = 256, 512, 256
    x_b = jax.random.normal(kx, (B2, N2, d_in2), dtype=jnp.float32)
    w1_b = jax.random.normal(k1, (d_in2, h2), jnp.float32) * 0.02
    b1_b = jax.random.normal(kb1, (h2,), jnp.float32) * 0.01
    w2_b = jax.random.normal(k2, (d_in2, h2), jnp.float32) * 0.02
    b2_b = jax.random.normal(kb2, (h2,), jnp.float32) * 0.01
    w3_b = jax.random.normal(k3, (h2, d_out2), jnp.float32) * 0.02
    b3_b = jax.random.normal(kb3, (d_out2,), jnp.float32) * 0.01

    out_b = swiglu_pallas(x_b, w1_b, b1_b, w2_b, b2_b, w3_b, b3_b, tm=128, th=256)
    out_b = jax.block_until_ready(out_b)
    ref_b = _swiglu_ref(x_b, w1_b, b1_b, w2_b, b2_b, w3_b, b3_b)
    assert out_b.shape == (B2, N2, d_out2)
    assert jnp.allclose(out_b, ref_b, atol=5e-2, rtol=5e-2), "mismatch vs reference (case 2)"

    # drop=0.0 -> dropout is identity; ffn_ln is Identity (subln=False default).
    print("KERNEL_OK")
</pallas_src>

<mosaic_0001>
module attributes {stable_mosaic.version = 11 : i64} {
  func.func @_swiglu_kernel(%arg0: i32, %arg1: i32, %arg2: memref<16x128xbf16, #tpu.memory_space<vmem>>, %arg3: memref<128x128xbf16, #tpu.memory_space<vmem>>, %arg4: memref<1x128xf32, #tpu.memory_space<vmem>>, %arg5: memref<128x128xbf16, #tpu.memory_space<vmem>>, %arg6: memref<1x128xf32, #tpu.memory_space<vmem>>, %arg7: memref<128x128xbf16, #tpu.memory_space<vmem>>, %arg8: memref<1x128xf32, #tpu.memory_space<vmem>>, %arg9: memref<16x128xf32, #tpu.memory_space<vmem>>, %arg10: memref<16x128xf32, #tpu.memory_space<vmem>>) attributes {dimension_semantics = [#tpu.dimension_semantics<parallel>, #tpu.dimension_semantics<arbitrary>], iteration_bounds = array<i64: 1, 1>, scalar_prefetch = 0 : i64, scratch_operands = 1 : i64, tpu.core_type = #tpu.core_type<tc>, window_params = [{transform_indices = @transform_0, window_bounds = array<i64: 16, 128>}, {transform_indices = @transform_1, window_bounds = array<i64: 128, 128>}, {transform_indices = @transform_2, window_bounds = array<i64: 1, 128>}, {transform_indices = @transform_3, window_bounds = array<i64: 128, 128>}, {transform_indices = @transform_4, window_bounds = array<i64: 1, 128>}, {transform_indices = @transform_5, window_bounds = array<i64: 128, 128>}, {pipeline_mode = #tpu.pipeline_mode<synchronous>, transform_indices = @transform_6, window_bounds = array<i64: 1, 128>}, {transform_indices = @transform_7, window_bounds = array<i64: 16, 128>}]} {
    %c0_i32 = arith.constant 0 : i32
    %0 = arith.cmpi eq, %arg1, %c0_i32 : i32
    %1 = arith.extui %0 : i1 to i32
    %c0_i32_0 = arith.constant 0 : i32
    %2 = arith.cmpi ne, %1, %c0_i32_0 : i32
    scf.if %2 {
      %cst_21 = arith.constant 0.000000e+00 : f32
      %30 = vector.broadcast %cst_21 : f32 to vector<16x128xf32>
      %c0_22 = arith.constant 0 : index
      %c0_23 = arith.constant 0 : index
      %31 = vector.load %arg10[%c0_22, %c0_23] : memref<16x128xf32, #tpu.memory_space<vmem>>, vector<16x128xf32>
      tpu.vector_store %arg10[%c0_22, %c0_23], %30 {strides = array<i32>} : memref<16x128xf32, #tpu.memory_space<vmem>>, vector<16x128xf32>,
    } else {
    }
    %c0 = arith.constant 0 : index
    %c0_1 = arith.constant 0 : index
    %3 = vector.load %arg2[%c0, %c0_1] : memref<16x128xbf16, #tpu.memory_space<vmem>>, vector<16x128xbf16>
    %c0_2 = arith.constant 0 : index
    %c0_3 = arith.constant 0 : index
    %4 = vector.load %arg3[%c0_2, %c0_3] : memref<128x128xbf16, #tpu.memory_space<vmem>>, vector<128x128xbf16>
    %cst = arith.constant dense<0.000000e+00> : vector<16x128xf32>
    %5 = tpu.matmul %3, %4, %cst {dimension_numbers = #tpu.dot_dimension_numbers<[1], [0], [0], [1], [0, 0, 1, 1], [], []>} : vector<16x128xbf16>, vector<128x128xbf16>, vector<16x128xf32> -> vector<16x128xf32>
    %c0_4 = arith.constant 0 : index
    %c0_5 = arith.constant 0 : index
    %6 = vector.load %arg4[%c0_4, %c0_5] : memref<1x128xf32, #tpu.memory_space<vmem>>, vector<1x128xf32>
    %7 = vector.broadcast %6 : vector<1x128xf32> to vector<16x128xf32>
    %8 = arith.addf %5, %7 : vector<16x128xf32>
    %c0_6 = arith.constant 0 : index
    %c0_7 = arith.constant 0 : index
    %9 = vector.load %arg5[%c0_6, %c0_7] : memref<128x128xbf16, #tpu.memory_space<vmem>>, vector<128x128xbf16>
    %cst_8 = arith.constant dense<0.000000e+00> : vector<16x128xf32>
    %10 = tpu.matmul %3, %9, %cst_8 {dimension_numbers = #tpu.dot_dimension_numbers<[1], [0], [0], [1], [0, 0, 1, 1], [], []>} : vector<16x128xbf16>, vector<128x128xbf16>, vector<16x128xf32> -> vector<16x128xf32>
    %c0_9 = arith.constant 0 : index
    %c0_10 = arith.constant 0 : index
    %11 = vector.load %arg6[%c0_9, %c0_10] : memref<1x128xf32, #tpu.memory_space<vmem>>, vector<1x128xf32>
    %12 = vector.broadcast %11 : vector<1x128xf32> to vector<16x128xf32>
    %13 = arith.addf %10, %12 : vector<16x128xf32>
    %14 = arith.negf %8 : vector<16x128xf32>
    %15 = math.exp %14 : vector<16x128xf32>
    %cst_11 = arith.constant 1.000000e+00 : f32
    %16 = vector.broadcast %cst_11 : f32 to vector<16x128xf32>
    %17 = arith.addf %16, %15 : vector<16x128xf32>
    %18 = arith.divf %16, %17 : vector<16x128xf32>
    %19 = arith.mulf %8, %18 : vector<16x128xf32>
    %20 = arith.mulf %19, %13 : vector<16x128xf32>
    %c0_12 = arith.constant 0 : index
    %c0_13 = arith.constant 0 : index
    %21 = vector.load %arg10[%c0_12, %c0_13] : memref<16x128xf32, #tpu.memory_space<vmem>>, vector<16x128xf32>
    %22 = arith.truncf %20 : vector<16x128xf32> to vector<16x128xbf16>
    %c0_14 = arith.constant 0 : index
    %c0_15 = arith.constant 0 : index
    %23 = vector.load %arg7[%c0_14, %c0_15] : memref<128x128xbf16, #tpu.memory_space<vmem>>, vector<128x128xbf16>
    %cst_16 = arith.constant dense<0.000000e+00> : vector<16x128xf32>
    %24 = tpu.matmul %22, %23, %cst_16 {dimension_numbers = #tpu.dot_dimension_numbers<[1], [0], [0], [1], [0, 0, 1, 1], [], []>} : vector<16x128xbf16>, vector<128x128xbf16>, vector<16x128xf32> -> vector<16x128xf32>
    %25 = arith.addf %21, %24 : vector<16x128xf32>
    %c0_17 = arith.constant 0 : index
    %c0_18 = arith.constant 0 : index
    %26 = vector.load %arg10[%c0_17, %c0_18] : memref<16x128xf32, #tpu.memory_space<vmem>>, vector<16x128xf32>
    tpu.vector_store %arg10[%c0_17, %c0_18], %25 {strides = array<i32>} : memref<16x128xf32, #tpu.memory_space<vmem>>, vector<16x128xf32>,
    %c0_i32_19 = arith.constant 0 : i32
    %27 = arith.cmpi eq, %arg1, %c0_i32_19 : i32
    %28 = arith.extui %27 : i1 to i32
    %c0_i32_20 = arith.constant 0 : i32
    %29 = arith.cmpi ne, %28, %c0_i32_20 : i32
    scf.if %29 {
      %c0_21 = arith.constant 0 : index
      %c0_22 = arith.constant 0 : index
      %30 = vector.load %arg10[%c0_21, %c0_22] : memref<16x128xf32, #tpu.memory_space<vmem>>, vector<16x128xf32>
      %c0_23 = arith.constant 0 : index
      %c0_24 = arith.constant 0 : index
      %31 = vector.load %arg8[%c0_23, %c0_24] : memref<1x128xf32, #tpu.memory_space<vmem>>, vector<1x128xf32>
      %32 = vector.broadcast %31 : vector<1x128xf32> to vector<16x128xf32>
      %33 = arith.addf %30, %32 : vector<16x128xf32>
      %c0_25 = arith.constant 0 : index
      %c0_26 = arith.constant 0 : index
      %34 = vector.load %arg9[%c0_25, %c0_26] : memref<16x128xf32, #tpu.memory_space<vmem>>, vector<16x128xf32>
      tpu.vector_store %arg9[%c0_25, %c0_26], %33 {strides = array<i32>} : memref<16x128xf32, #tpu.memory_space<vmem>>, vector<16x128xf32>,
    } else {
    }
    return
  }
  func.func @transform_0(%arg0: i32, %arg1: i32) -> (i32, i32) {
    %c0_i32 = arith.constant 0 : i32
    %c0_i32_0 = arith.constant 0 : i32
    return %arg0, %c0_i32 : i32, i32
  }
  func.func @transform_1(%arg0: i32, %arg1: i32) -> (i32, i32) {
    %c0_i32 = arith.constant 0 : i32
    %c0_i32_0 = arith.constant 0 : i32
    return %c0_i32, %arg1 : i32, i32
  }
  func.func @transform_2(%arg0: i32, %arg1: i32) -> (i32, i32) {
    %c0_i32 = arith.constant 0 : i32
    %c0_i32_0 = arith.constant 0 : i32
    return %c0_i32, %arg1 : i32, i32
  }
  func.func @transform_3(%arg0: i32, %arg1: i32) -> (i32, i32) {
    %c0_i32 = arith.constant 0 : i32
    %c0_i32_0 = arith.constant 0 : i32
    return %c0_i32, %arg1 : i32, i32
  }
  func.func @transform_4(%arg0: i32, %arg1: i32) -> (i32, i32) {
    %c0_i32 = arith.constant 0 : i32
    %c0_i32_0 = arith.constant 0 : i32
    return %c0_i32, %arg1 : i32, i32
  }
  func.func @transform_5(%arg0: i32, %arg1: i32) -> (i32, i32) {
    %c0_i32 = arith.constant 0 : i32
    %c0_i32_0 = arith.constant 0 : i32
    return %arg1, %c0_i32 : i32, i32
  }
  func.func @transform_6(%arg0: i32, %arg1: i32) -> (i32, i32) {
    %c0_i32 = arith.constant 0 : i32
    %c0_i32_0 = arith.constant 0 : i32
    %c0_i32_1 = arith.constant 0 : i32
    return %c0_i32, %c0_i32_0 : i32, i32
  }
  func.func @transform_7(%arg0: i32, %arg1: i32) -> (i32, i32) {
    %c0_i32 = arith.constant 0 : i32
    %c0_i32_0 = arith.constant 0 : i32
    return %arg0, %c0_i32 : i32, i32
  }
}

</mosaic_0001>

<llo_original>
// kernel: tpu_custom_call.1
$region0: #{tpu_custom_call.1}
  #allocation0 [shape = 'u32[]', space=smem, size = 0x4, offset = 0x4, fixed_abs, tag = 'smem constant byte address 0x4 - core index']
  #allocation1 [shape = 'u32[72,128]{1,0:T(1,128)}', space=vmem, size = 0x9000, scoped, tag = 'internal scratch']
  #allocation2 [shape = 'f32[16,128]{1,0:T(8,128)}', space=vmem, size = 0x2000, scoped, tag = 'scratch operand']
  %s0 = inlined_call_operand.hbm [shape: bf16[16,128], index: 0, kind: input, shape index: {}]
  %s1 = inlined_call_operand.hbm [shape: bf16[128,128], index: 1, kind: input, shape index: {}]
  %s2 = inlined_call_operand.vmem [shape: f32[1,128], index: 2, kind: input, shape index: {}]
  %s3 = inlined_call_operand.hbm [shape: bf16[128,128], index: 3, kind: input, shape index: {}]
  %s4 = inlined_call_operand.vmem [shape: f32[1,128], index: 4, kind: input, shape index: {}]
  %s5 = inlined_call_operand.hbm [shape: bf16[128,128], index: 5, kind: input, shape index: {}]
  %s6 = inlined_call_operand.vmem [shape: f32[1,128], index: 6, kind: input, shape index: {}]
  %s7 = inlined_call_operand.hbm [shape: f32[16,128], index: 7, kind: output, shape index: {}]
  %s8 = sld [smem:[#allocation0]]
  $region62: #{tpu_custom_call.1} parent=0
    _
  %s10 = ssub.s32 1, %s8
  %s11 = scalar_select 0, %s10, %s8
  $region1: #{tpu_custom_call.1} parent=0
    #allocation3 [shape = 'u8[4096]{0}', space=vmem, size = 0x1000, scoped, tag = 'input window, operand 0, single buffered']
    #allocation4 [shape = 's32[1]{0}', space=sflag, size = 0x4, scoped, tag = 'scoped memory for tpu_custom_call.1']
    #allocation5 [shape = 's32[1]{0}', space=sflag, size = 0x4, scoped, tag = 'scoped memory for tpu_custom_call.1']
    #allocation6 [shape = 'u8[32768]{0}', space=vmem, size = 0x8000, scoped, tag = 'input window, operand 1, single buffered']
    #allocation7 [shape = 's32[1]{0}', space=sflag, size = 0x4, scoped, tag = 'scoped memory for tpu_custom_call.1']
    #allocation8 [shape = 'u8[32768]{0}', space=vmem, size = 0x8000, scoped, tag = 'input window, operand 3, single buffered']
    #allocation9 [shape = 'u8[32768]{0}', space=vmem, size = 0x8000, scoped, tag = 'input window, operand 5, single buffered']
    #allocation10 [shape = 's32[1]{0}', space=sflag, size = 0x4, scoped, tag = 'scoped memory for tpu_custom_call.1']
    #allocation11 [shape = 'u8[8192]{0}', space=vmem, size = 0x2000, scoped, tag = 'output window, operand 0, single buffered']
    %12 = vsyncpa [#allocation4], 0
    %13 = vsyncpa [#allocation7], 0
    %14 = vsyncpa [#allocation10], 0
    %15 = vsyncpa [#allocation5], 0
    // Predicated region
    $region2: #{tpu_custom_call.1} parent=1 // pred_check
      _
    $region3: #{tpu_custom_call.1} parent=1 // pred_check_branch
      %17 = sbr.rel (0) target = $region5
    $region4: #{tpu_custom_call.1} parent=1 // pred_region
      %19 = vsyncadd [#allocation4], 0
      %s20 = sshll.u32 %s0, 4
      %s21 = int_to_ptr.hbm [resolvable:$true] %s20
      %s22 = sshll.u32 [#allocation3], 4
      %s23 = int_to_ptr.vmem [resolvable:$true] %s22
      %28 = dma.hbm_to_vmem [thread:$0]  %s21, 128, %s23, [#allocation4], 64, 64, 4
    $region5: #{tpu_custom_call.1} parent=1 // pred_fallthru
      _
    // Predicated region
    $region6: #{tpu_custom_call.1} parent=1 // pred_check
      _
    $region7: #{tpu_custom_call.1} parent=1 // pred_check_branch
      %30 = sbr.rel (0) target = $region9
    $region8: #{tpu_custom_call.1} parent=1 // pred_region
      %32 = vsyncadd [#allocation7], 0
      %s33 = sshll.u32 %s1, 4
      %s34 = int_to_ptr.hbm [resolvable:$true] %s33
      %s35 = sshll.u32 [#allocation6], 4
      %s36 = int_to_ptr.vmem [resolvable:$true] %s35
      %41 = dma.hbm_to_vmem [thread:$0]  %s34, 1024, %s36, [#allocation7], 64, 64, 4
    $region9: #{tpu_custom_call.1} parent=1 // pred_fallthru
      _
    // Predicated region
    $region10: #{tpu_custom_call.1} parent=1 // pred_check
      _
    $region11: #{tpu_custom_call.1} parent=1 // pred_check_branch
      %43 = sbr.rel (0) target = $region13
    $region12: #{tpu_custom_call.1} parent=1 // pred_region
      _
    $region13: #{tpu_custom_call.1} parent=1 // pred_fallthru
      _
    // Predicated region
    $region14: #{tpu_custom_call.1} parent=1 // pred_check
      _
    $region15: #{tpu_custom_call.1} parent=1 // pred_check_branch
      %45 = sbr.rel (0) target = $region17
    $region16: #{tpu_custom_call.1} parent=1 // pred_region
      %47 = vsyncadd [#allocation7], 0
      %s48 = sshll.u32 %s3, 4
      %s49 = int_to_ptr.hbm [resolvable:$true] %s48
      %s50 = sshll.u32 [#allocation8], 4
      %s51 = int_to_ptr.vmem [resolvable:$true] %s50
      %56 = dma.hbm_to_vmem [thread:$0]  %s49, 1024, %s51, [#allocation7], 64, 64, 4
    $region17: #{tpu_custom_call.1} parent=1 // pred_fallthru
      _
    // Predicated region
    $region18: #{tpu_custom_call.1} parent=1 // pred_check
      _
    $region19: #{tpu_custom_call.1} parent=1 // pred_check_branch
      %58 = sbr.rel (0) target = $region21
    $region20: #{tpu_custom_call.1} parent=1 // pred_region
      _
    $region21: #{tpu_custom_call.1} parent=1 // pred_fallthru
      _
    // Predicated region
    $region22: #{tpu_custom_call.1} parent=1 // pred_check
      _
    $region23: #{tpu_custom_call.1} parent=1 // pred_check_branch
      %60 = sbr.rel (0) target = $region25
    $region24: #{tpu_custom_call.1} parent=1 // pred_region
      %62 = vsyncadd [#allocation10], 0
      %s63 = sshll.u32 %s5, 4
      %s64 = int_to_ptr.hbm [resolvable:$true] %s63
      %s65 = sshll.u32 [#allocation9], 4
      %s66 = int_to_ptr.vmem [resolvable:$true] %s65
      %71 = dma.hbm_to_vmem [thread:$0]  %s64, 1024, %s66, [#allocation10], 64, 64, 4
    $region25: #{tpu_custom_call.1} parent=1 // pred_fallthru
      _
    // Predicated region
    $region26: #{tpu_custom_call.1} parent=1 // pred_check
      _
    $region27: #{tpu_custom_call.1} parent=1 // pred_check_branch
      %73 = sbr.rel (0) target = $region29
    $region28: #{tpu_custom_call.1} parent=1 // pred_region
      _
    $region29: #{tpu_custom_call.1} parent=1 // pred_fallthru
      _
    // Predicated region
    $region30: #{tpu_custom_call.1} parent=1 // pred_check
      _
    $region31: #{tpu_custom_call.1} parent=1 // pred_check_branch
      %75 = sbr.rel (0) target = $region33
    $region32: #{tpu_custom_call.1} parent=1 // pred_region
      %77 = dma.done [#allocation4], 128
    $region33: #{tpu_custom_call.1} parent=1 // pred_fallthru
      _
    // Predicated region
    $region34: #{tpu_custom_call.1} parent=1 // pred_check
      _
    $region35: #{tpu_custom_call.1} parent=1 // pred_check_branch
      %79 = sbr.rel (0) target = $region37
    $region36: #{tpu_custom_call.1} parent=1 // pred_region
      %81 = dma.done [#allocation7], 1024
    $region37: #{tpu_custom_call.1} parent=1 // pred_fallthru
      _
    // Predicated region
    $region38: #{tpu_custom_call.1} parent=1 // pred_check
      _
    $region39: #{tpu_custom_call.1} parent=1 // pred_check_branch
      %83 = sbr.rel (0) target = $region41
    $region40: #{tpu_custom_call.1} parent=1 // pred_region
      %85 = dma.done [#allocation7], 1024
    $region41: #{tpu_custom_call.1} parent=1 // pred_fallthru
      _
    // Predicated region
    $region42: #{tpu_custom_call.1} parent=1 // pred_check
      _
    $region43: #{tpu_custom_call.1} parent=1 // pred_check_branch
      %87 = sbr.rel (0) target = $region45
    $region44: #{tpu_custom_call.1} parent=1 // pred_region
      %89 = dma.done [#allocation10], 1024
    $region45: #{tpu_custom_call.1} parent=1 // pred_fallthru
      _
    %p90 = scmp.eq.s32.totalorder 0, 0
    // Predicated region
    $region46: #{tpu_custom_call.1} parent=1 // pred_check
      %p91 = pneg %p90
    $region47: #{tpu_custom_call.1} parent=1 // pred_check_branch
      %93 = sbr.rel (%p91) target = $region49
    $region48: #{tpu_custom_call.1} parent=1 // pred_region
      %94 = vst [vmem:[#allocation2] sm:$0xff] 0.0
      %95 = vst [vmem:[#allocation2 + $0x8] sm:$0xff] 0.0
    $region49: #{tpu_custom_call.1} parent=1 // pred_fallthru
      _
    %v96 = vld [vmem:[#allocation3] sm:$0xf]
    %v97 = vld [vmem:[#allocation3 + $0x4] sm:$0xf]
    %v98 = vld [vmem:[#allocation6] sm:$0xf]
    %v99 = vld [vmem:[#allocation6 + $0x4] sm:$0xf]
    %v100 = vld [vmem:[#allocation6 + $0x8] sm:$0xf]
    %v101 = vld [vmem:[#allocation6 + $0xc] sm:$0xf]
    %v102 = vld [vmem:[#allocation6 + $0x10] sm:$0xf]
    %v103 = vld [vmem:[#allocation6 + $0x14] sm:$0xf]
    %v104 = vld [vmem:[#allocation6 + $0x18] sm:$0xf]
    %v105 = vld [vmem:[#allocation6 + $0x1c] sm:$0xf]
    %v106 = vld [vmem:[#allocation6 + $0x20] sm:$0xf]
    %v107 = vld [vmem:[#allocation6 + $0x24] sm:$0xf]
    %v108 = vld [vmem:[#allocation6 + $0x28] sm:$0xf]
    %v109 = vld [vmem:[#allocation6 + $0x2c] sm:$0xf]
    %v110 = vld [vmem:[#allocation6 + $0x30] sm:$0xf]
    %v111 = vld [vmem:[#allocation6 + $0x34] sm:$0xf]
    %v112 = vld [vmem:[#allocation6 + $0x38] sm:$0xf]
    %v113 = vld [vmem:[#allocation6 + $0x3c] sm:$0xf]
    %v114 = vld [vmem:[%s2] sm:$0x1]
    %v116 = vperm.slane %v114, 0
    %v120 = vunpack.c.l.b16 %v96
    %v121 = vunpack.c.l.b16 %v97
    %v122 = vpack.c.b16 %v121, %v120
    %v140 = vunpack.c.l.b16 %v98
    %v141 = vunpack.c.l.b16 %v99
    %v142 = vunpack.c.l.b16 %v100
    %v143 = vunpack.c.l.b16 %v101
    %v144 = vunpack.c.l.b16 %v102
    %v145 = vunpack.c.l.b16 %v103
    %v146 = vunpack.c.l.b16 %v104
    %v147 = vunpack.c.l.b16 %v105
    %v148 = vunpack.c.l.b16 %v106
    %v149 = vunpack.c.l.b16 %v107
    %v150 = vunpack.c.l.b16 %v108
    %v151 = vunpack.c.l.b16 %v109
    %v152 = vunpack.c.l.b16 %v110
    %v153 = vunpack.c.l.b16 %v111
    %v154 = vunpack.c.l.b16 %v112
    %v155 = vunpack.c.l.b16 %v113
    %v156 = vpack.c.b16 %v141, %v140
    %v157 = vpack.c.b16 %v143, %v142
    %v158 = vpack.c.b16 %v145, %v144
    %v159 = vpack.c.b16 %v147, %v146
    %v160 = vpack.c.b16 %v149, %v148
    %v161 = vpack.c.b16 %v151, %v150
    %v162 = vpack.c.b16 %v153, %v152
    %v163 = vpack.c.b16 %v155, %v154
    %172 = vmatpush.bf16.msra.mxu0 %v163
    %173 = vmatpush.bf16.msra.mxu0 %v162
    %174 = vmatpush.bf16.msra.mxu0 %v161
    %175 = vmatpush.bf16.msra.mxu0 %v160
    %176 = vmatpush.bf16.msra.mxu0 %v159
    %177 = vmatpush.bf16.msra.mxu0 %v158
    %178 = vmatpush.bf16.msra.mxu0 %v157
    %179 = vmatpush.bf16.msra.mxu0 %v156
    %180 = vmatmul.bf16.gmra.mxu0 %v122
    %v181 = vpop.f32.mrf.mxu0
    %v182 = vadd.f32 %v116, %v181
    %v183 = vpop.f32.mrf.mxu0
    %v184 = vadd.f32 %v116, %v183
    %185 = vdwg.mxu0
    %v186 = vld [vmem:[#allocation8] sm:$0xf]
    %v187 = vld [vmem:[#allocation8 + $0x4] sm:$0xf]
    %v188 = vld [vmem:[#allocation8 + $0x8] sm:$0xf]
    %v189 = vld [vmem:[#allocation8 + $0xc] sm:$0xf]
    %v190 = vld [vmem:[#allocation8 + $0x10] sm:$0xf]
    %v191 = vld [vmem:[#allocation8 + $0x14] sm:$0xf]
    %v192 = vld [vmem:[#allocation8 + $0x18] sm:$0xf]
    %v193 = vld [vmem:[#allocation8 + $0x1c] sm:$0xf]
    %v194 = vld [vmem:[#allocation8 + $0x20] sm:$0xf]
    %v195 = vld [vmem:[#allocation8 + $0x24] sm:$0xf]
    %v196 = vld [vmem:[#allocation8 + $0x28] sm:$0xf]
    %v197 = vld [vmem:[#allocation8 + $0x2c] sm:$0xf]
    %v198 = vld [vmem:[#allocation8 + $0x30] sm:$0xf]
    %v199 = vld [vmem:[#allocation8 + $0x34] sm:$0xf]
    %v200 = vld [vmem:[#allocation8 + $0x38] sm:$0xf]
    %v201 = vld [vmem:[#allocation8 + $0x3c] sm:$0xf]
    %v202 = vld [vmem:[%s4] sm:$0x1]
    %v204 = vperm.slane %v202, 0
    %v222 = vunpack.c.l.b16 %v186
    %v223 = vunpack.c.l.b16 %v187
    %v224 = vunpack.c.l.b16 %v188
    %v225 = vunpack.c.l.b16 %v189
    %v226 = vunpack.c.l.b16 %v190
    %v227 = vunpack.c.l.b16 %v191
    %v228 = vunpack.c.l.b16 %v192
    %v229 = vunpack.c.l.b16 %v193
    %v230 = vunpack.c.l.b16 %v194
    %v231 = vunpack.c.l.b16 %v195
    %v232 = vunpack.c.l.b16 %v196
    %v233 = vunpack.c.l.b16 %v197
    %v234 = vunpack.c.l.b16 %v198
    %v235 = vunpack.c.l.b16 %v199
    %v236 = vunpack.c.l.b16 %v200
    %v237 = vunpack.c.l.b16 %v201
    %v238 = vpack.c.b16 %v223, %v222
    %v239 = vpack.c.b16 %v225, %v224
    %v240 = vpack.c.b16 %v227, %v226
    %v241 = vpack.c.b16 %v229, %v228
    %v242 = vpack.c.b16 %v231, %v230
    %v243 = vpack.c.b16 %v233, %v232
    %v244 = vpack.c.b16 %v235, %v234
    %v245 = vpack.c.b16 %v237, %v236
    %254 = vmatpush.bf16.msra.mxu0 %v245
    %255 = vmatpush.bf16.msra.mxu0 %v244
    %256 = vmatpush.bf16.msra.mxu0 %v243
    %257 = vmatpush.bf16.msra.mxu0 %v242
    %258 = vmatpush.bf16.msra.mxu0 %v241
    %259 = vmatpush.bf16.msra.mxu0 %v240
    %260 = vmatpush.bf16.msra.mxu0 %v239
    %261 = vmatpush.bf16.msra.mxu0 %v238
    %262 = vmatmul.bf16.gmra.mxu0 %v122
    %v263 = vpop.f32.mrf.mxu0
    %v264 = vadd.f32 %v204, %v263
    %v265 = vpop.f32.mrf.mxu0
    %v266 = vadd.f32 %v204, %v265
    %267 = vdwg.mxu0
    %v268 = vxor.u32 %v182, 2147483648
    %v269 = vxor.u32 %v184, 2147483648
    %v270 = vmul.f32 %v268, 1.442695
    %v271 = vpow.pop %v270
    %v272 = vmul.f32 %v269, 1.442695
    %v273 = vpow.pop %v272
    %v274 = vadd.f32 %v271, 1.0
    %v275 = vadd.f32 %v273, 1.0
    %v276 = vrcp.pop %v274
    %v277 = vmul.f32 %v274, %v276
    %v278 = vsub.f32 1.0, %v277
    %v279 = vmul.f32 %v276, %v278
    %v280 = vadd.f32 %v276, %v279
    %vm281 = vweird.f32 %v274
    %vm282 = vweird.f32 %v276
    %vm283 = vmor %vm281, %vm282
    %v284 = vsel %vm283, %v276, %v280
    %v285 = vand.u32 2147483647, %v274
    %vm286 = vcmp.eq.f32.partialorder %v285, 8.507059e+37
    %v287 = vand.u32 %v274, 2147483648
    %v288 = vor.u32 1.1754944e-38, %v287
    %v289 = vsel %vm286, %v288, %v284
    %v290 = vmul.f32 1.0, %v289
    %v291 = vrcp.pop %v275
    %v292 = vmul.f32 %v275, %v291
    %v293 = vsub.f32 1.0, %v292
    %v294 = vmul.f32 %v291, %v293
    %v295 = vadd.f32 %v291, %v294
    %vm296 = vweird.f32 %v275
    %vm297 = vweird.f32 %v291
    %vm298 = vmor %vm296, %vm297
    %v299 = vsel %vm298, %v291, %v295
    %v300 = vand.u32 2147483647, %v275
    %vm301 = vcmp.eq.f32.partialorder %v300, 8.507059e+37
    %v302 = vand.u32 %v275, 2147483648
    %v303 = vor.u32 1.1754944e-38, %v302
    %v304 = vsel %vm301, %v303, %v299
    %v305 = vmul.f32 1.0, %v304
    %v306 = vmul.f32 %v182, %v290
    %v307 = vmul.f32 %v184, %v305
    %v308 = vmul.f32 %v306, %v264
    %v309 = vmul.f32 %v307, %v266
    %v310 = vld [vmem:[#allocation2] sm:$0xff]
    %v311 = vld [vmem:[#allocation2 + $0x8] sm:$0xff]
    %v312 = vpack.c.bf16 %v309, %v308
    %v313 = vld [vmem:[#allocation9] sm:$0xf]
    %v314 = vld [vmem:[#allocation9 + $0x4] sm:$0xf]
    %v315 = vld [vmem:[#allocation9 + $0x8] sm:$0xf]
    %v316 = vld [vmem:[#allocation9 + $0xc] sm:$0xf]
    %v317 = vld [vmem:[#allocation9 + $0x10] sm:$0xf]
    %v318 = vld [vmem:[#allocation9 + $0x14] sm:$0xf]
    %v319 = vld [vmem:[#allocation9 + $0x18] sm:$0xf]
    %v320 = vld [vmem:[#allocation9 + $0x1c] sm:$0xf]
    %v321 = vld [vmem:[#allocation9 + $0x20] sm:$0xf]
    %v322 = vld [vmem:[#allocation9 + $0x24] sm:$0xf]
    %v323 = vld [vmem:[#allocation9 + $0x28] sm:$0xf]
    %v324 = vld [vmem:[#allocation9 + $0x2c] sm:$0xf]
    %v325 = vld [vmem:[#allocation9 + $0x30] sm:$0xf]
    %v326 = vld [vmem:[#allocation9 + $0x34] sm:$0xf]
    %v327 = vld [vmem:[#allocation9 + $0x38] sm:$0xf]
    %v328 = vld [vmem:[#allocation9 + $0x3c] sm:$0xf]
    %v345 = vunpack.c.l.b16 %v313
    %v346 = vunpack.c.l.b16 %v314
    %v347 = vunpack.c.l.b16 %v315
    %v348 = vunpack.c.l.b16 %v316
    %v349 = vunpack.c.l.b16 %v317
    %v350 = vunpack.c.l.b16 %v318
    %v351 = vunpack.c.l.b16 %v319
    %v352 = vunpack.c.l.b16 %v320
    %v353 = vunpack.c.l.b16 %v321
    %v354 = vunpack.c.l.b16 %v322
    %v355 = vunpack.c.l.b16 %v323
    %v356 = vunpack.c.l.b16 %v324
    %v357 = vunpack.c.l.b16 %v325
    %v358 = vunpack.c.l.b16 %v326
    %v359 = vunpack.c.l.b16 %v327
    %v360 = vunpack.c.l.b16 %v328
    %v361 = vpack.c.b16 %v346, %v345
    %v362 = vpack.c.b16 %v348, %v347
    %v363 = vpack.c.b16 %v350, %v349
    %v364 = vpack.c.b16 %v352, %v351
    %v365 = vpack.c.b16 %v354, %v353
    %v366 = vpack.c.b16 %v356, %v355
    %v367 = vpack.c.b16 %v358, %v357
    %v368 = vpack.c.b16 %v360, %v359
    %377 = vmatpush.bf16.msra.mxu0 %v368
    %378 = vmatpush.bf16.msra.mxu0 %v367
    %379 = vmatpush.bf16.msra.mxu0 %v366
    %380 = vmatpush.bf16.msra.mxu0 %v365
    %381 = vmatpush.bf16.msra.mxu0 %v364
    %382 = vmatpush.bf16.msra.mxu0 %v363
    %383 = vmatpush.bf16.msra.mxu0 %v362
    %384 = vmatpush.bf16.msra.mxu0 %v361
    %385 = vmatmul.bf16.gmra.mxu0 %v312
    %v386 = vpop.f32.mrf.mxu0
    %v387 = vadd.f32 0.0, %v386
    %v388 = vpop.f32.mrf.mxu0
    %v389 = vadd.f32 0.0, %v388
    %390 = vdwg.mxu0
    %v391 = vadd.f32 %v310, %v387
    %v392 = vadd.f32 %v311, %v389
    %393 = vst [vmem:[#allocation2] sm:$0xff] %v391
    %394 = vst [vmem:[#allocation2 + $0x8] sm:$0xff] %v392
    // Predicated region
    $region50: #{tpu_custom_call.1} parent=1 // pred_check
      %p395 = pneg %p90
    $region51: #{tpu_custom_call.1} parent=1 // pred_check_branch
      %397 = sbr.rel (%p395) target = $region53
    $region52: #{tpu_custom_call.1} parent=1 // pred_region
      %v398 = vld [vmem:[#allocation2] sm:$0xff]
      %v399 = vld [vmem:[#allocation2 + $0x8] sm:$0xff]
      %v400 = vld [vmem:[%s6] sm:$0x1]
      %v402 = vperm.slane %v400, 0
      %v404 = vadd.f32 %v398, %v402
      %v405 = vadd.f32 %v399, %v402
      %406 = vst [vmem:[#allocation11] sm:$0xff] %v404
      %407 = vst [vmem:[#allocation11 + $0x8] sm:$0xff] %v405
    $region53: #{tpu_custom_call.1} parent=1 // pred_fallthru
      _
    // Predicated region
    $region54: #{tpu_custom_call.1} parent=1 // pred_check
      _
    $region55: #{tpu_custom_call.1} parent=1 // pred_check_branch
      %409 = sbr.rel (0) target = $region57
    $region56: #{tpu_custom_call.1} parent=1 // pred_region
      %411 = vsyncadd [#allocation5], 0
      %s412 = sshll.u32 [#allocation11], 4
      %s413 = int_to_ptr.vmem [resolvable:$true] %s412
      %s414 = sshll.u32 %s7, 4
      %s415 = int_to_ptr.hbm [resolvable:$true] %s414
      %420 = dma.vmem_to_hbm [thread:$0]  %s413, 256, %s415, [#allocation5], 128, 128, 8
    $region57: #{tpu_custom_call.1} parent=1 // pred_fallthru
      _
    // Predicated region
    $region58: #{tpu_custom_call.1} parent=1 // pred_check
      _
    $region59: #{tpu_custom_call.1} parent=1 // pred_check_branch
      %422 = sbr.rel (0) target = $region61
    $region60: #{tpu_custom_call.1} parent=1 // pred_region
      %424 = dma.done [#allocation5], 256
    $region61: #{tpu_custom_call.1} parent=1 // pred_fallthru
      _
    %425 = vsyncpa [#allocation4], 1
    %426 = vsyncpa [#allocation7], 1
    %427 = vsyncpa [#allocation10], 1
    %428 = vsyncpa [#allocation5], 1

</llo_original>
